<compile_context>
chip_gen: v7x
topology: tpu7x:2x2x1
jax: 0.10.0
libtpu: 0.0.40
codegen_flags: <defaults>
</compile_context>

<pallas_src>
import jax
import jax.numpy as jnp
import numpy as np
from jax.experimental import pallas as pl
from jax.experimental.pallas import tpu as pltpu

# --- module config -----------------------------------------------------------
C1, C2, K = 4, 8, 3          # ch_in, ch_out, kernel
STRIDE, PAD = 1, K // 2      # autopad(k=3) -> p=1 ('same')
N, H, W = 2, 16, 16
EPS = 1e-5                   # nn.BatchNorm2d default eps
LANE, SUBLANE = 128, 8


# --- fused kernel + wrapper --------------------------------------------------
def conv_bn_silu(x_nchw, w_oihw, gamma, beta, eps=EPS):
    """x_nchw: (N, C1, H, W) f32, w_oihw: (C2, C1, K, K) f32, gamma/beta: (C2,)."""
    n, c1, h, w = x_nchw.shape
    c2, _, k, _ = w_oihw.shape
    pad = k // 2
    c1p = ((c1 + SUBLANE - 1) // SUBLANE) * SUBLANE   # 4 -> 8 (full sublane group)
    # Padded row stride: at least w + 2*pad, bumped until h*wp is a multiple of
    # 128 so per-image planes are lane-aligned (w=16, pad=1 -> wp=24).
    wp = w + 2 * pad
    while (h * wp) % LANE:
        wp += 1
    mpad = h * wp                         # per-image lane extent (384)
    slab = n * mpad                       # shared lane axis for the batch (768)
    kc = k * k * c1p                      # single-matmul contraction size (72)
    # One extra zero row at the bottom so every tap's length-mpad lane slice
    # (start offset up to (k-1)*wp + (k-1)) stays inside the flattened plane.
    plane = (h + 2 * pad + 1) * wp        # 19 * 24 = 456 lanes
    inv_count = 1.0 / float(n * h * w)    # BN reduces over N*H*W (biased variance)

    def kernel(x_ref, w_ref, g_ref, b_ref, o_ref, xcol_ref):
        # x_ref   : (N, C1p, plane)  zero-padded input, flattened spatial on lanes
        # w_ref   : (C2, Kc)         conv weights, columns ordered (kh, kw, cin)
        # g_ref   : (C2, 1), b_ref: (C2, 1)
        # o_ref   : (N, C2, mpad)
        # xcol_ref: (Kc, N*mpad)     shared im2col scratch (images side by side)

        # 1) in-kernel im2col: tap (kh, kw) of output column m = h_out*wp + w'
        #    reads lane m + kh*wp + kw of the padded plane.  Each write covers a
        #    full 8-sublane group at a 128-aligned lane offset (b*mpad).
        for b in range(n):
            for t in range(k * k):
                kh, kw = t // k, t % k
                s = kh * wp + kw
                xcol_ref[t * c1p:(t + 1) * c1p, b * mpad:(b + 1) * mpad] = \
                    x_ref[b, :, s:s + mpad]

        # 2) one (C2, Kc) @ (Kc, N*mpad) MXU contraction for the whole batch.
        acc = jnp.dot(w_ref[...], xcol_ref[...],
                      preferred_element_type=jnp.float32)          # (C2, slab)

        # 3) BatchNorm2d training-mode batch stats in one pass over the slab.
        #    Validity mask (lane % wp < W) built from an iota; since mpad is a
        #    multiple of wp the pattern is identical for every image.
        lane = jax.lax.broadcasted_iota(jnp.int32, (1, slab), 1)
        msk = jnp.where(lane % wp < w, 1.0, 0.0)                   # (1, slab) f32
        am = acc * msk                                             # masked acc, reused
        s1 = jnp.sum(am, axis=1, keepdims=True)                    # (C2, 1)
        s2 = jnp.sum(am * acc, axis=1, keepdims=True)              # (C2, 1)
        mean = s1 * inv_count
        var = jnp.maximum(s2 * inv_count - mean * mean, 0.0)       # biased, clamped
        scale = g_ref[...] * jax.lax.rsqrt(var + eps)              # (C2, 1)
        shift = b_ref[...] - mean * scale

        # 4) affine + SiLU (EUP exp + approximate EUP reciprocal), then one
        #    unmasked 128-aligned (C2, mpad) store per image.
        z = acc * scale + shift                                    # (C2, slab)
        y = z * pl.reciprocal(1.0 + jnp.exp(-z), approx=True)
        for b in range(n):
            o_ref[b] = y[:, b * mpad:(b + 1) * mpad]

    # --- wrapper prep: one pad, free reshape, tiny weight relayout ------------
    # channel pad 4->8, height pad (1, 1+1 extra row), width pad (1, wp-w-1).
    xp = jnp.pad(x_nchw, ((0, 0), (0, c1p - c1),
                          (pad, pad + 1), (pad, wp - w - pad)))
    xp = xp.reshape(n, c1p, plane)                                 # free reshape
    w2 = jnp.transpose(w_oihw, (0, 2, 3, 1))                       # (C2, kh, kw, cin)
    w2 = jnp.pad(w2, ((0, 0), (0, 0), (0, 0), (0, c1p - c1))).reshape(c2, kc)

    out = pl.pallas_call(
        kernel,
        out_shape=jax.ShapeDtypeStruct((n, c2, mpad), jnp.float32),
        in_specs=[
            pl.BlockSpec((n, c1p, plane), lambda: (0, 0, 0)),
            pl.BlockSpec((c2, kc), lambda: (0, 0)),
            pl.BlockSpec((c2, 1), lambda: (0, 0)),
            pl.BlockSpec((c2, 1), lambda: (0, 0)),
        ],
        out_specs=pl.BlockSpec((n, c2, mpad), lambda: (0, 0, 0)),
        scratch_shapes=[pltpu.VMEM((kc, slab), jnp.float32)],
    )(xp, w2, gamma.reshape(c2, 1), beta.reshape(c2, 1))

    # (N, C2, H*Wp) -> (N, C2, H, Wp) is a free reshape; dropping the padded
    # columns per row yields NCHW directly -- no transpose needed.
    return out.reshape(n, c2, h, wp)[:, :, :, :w]


# --- pure-JAX reference (verification only) ----------------------------------
def reference(x_nchw, w_oihw, gamma, beta):
    z = jax.lax.conv_general_dilated(
        x_nchw, w_oihw, window_strides=(STRIDE, STRIDE),
        padding=((PAD, PAD), (PAD, PAD)),
        dimension_numbers=("NCHW", "OIHW", "NCHW"))
    mean = z.mean(axis=(0, 2, 3), keepdims=True)
    var = ((z - mean) ** 2).mean(axis=(0, 2, 3), keepdims=True)
    zn = (z - mean) / jnp.sqrt(var + EPS)
    zn = zn * gamma.reshape(1, -1, 1, 1) + beta.reshape(1, -1, 1, 1)
    return zn * jax.nn.sigmoid(zn)


if __name__ == "__main__":
    key = jax.random.PRNGKey(0)
    kx, kw, kg, kb = jax.random.split(key, 4)

    x = jax.random.normal(kx, (N, C1, H, W), dtype=jnp.float32)
    wgt = jax.random.normal(kw, (C2, C1, K, K), dtype=jnp.float32) * 0.1
    gamma = 1.0 + 0.1 * jax.random.normal(kg, (C2,), dtype=jnp.float32)
    beta = 0.1 * jax.random.normal(kb, (C2,), dtype=jnp.float32)

    out = conv_bn_silu(x, wgt, gamma, beta)
    out = jax.block_until_ready(out)

    ref = jax.block_until_ready(reference(x, wgt, gamma, beta))
    np.testing.assert_allclose(np.asarray(out), np.asarray(ref),
                               rtol=5e-3, atol=5e-3)
    print("KERNEL_OK")
</pallas_src>

<mosaic_0001>
module attributes {stable_mosaic.version = 11 : i64} {
  func.func @kernel(%arg0: memref<2x8x456xf32, #tpu.memory_space<vmem>>, %arg1: memref<8x72xf32, #tpu.memory_space<vmem>>, %arg2: memref<8x1xf32, #tpu.memory_space<vmem>>, %arg3: memref<8x1xf32, #tpu.memory_space<vmem>>, %arg4: memref<2x8x384xf32, #tpu.memory_space<vmem>>, %arg5: memref<72x768xf32, #tpu.memory_space<vmem>>) attributes {dimension_semantics = [], scalar_prefetch = 0 : i64, scratch_operands = 1 : i64, tpu.core_type = #tpu.core_type<tc>} {
    %c0 = arith.constant 0 : index
    %c0_0 = arith.constant 0 : index
    %c0_1 = arith.constant 0 : index
    %0 = vector.load %arg0[%c0, %c0_0, %c0_1] : memref<2x8x456xf32, #tpu.memory_space<vmem>>, vector<1x8x384xf32>
    %1 = vector.shape_cast %0 : vector<1x8x384xf32> to vector<8x384xf32>
    %c0_2 = arith.constant 0 : index
    %c0_3 = arith.constant 0 : index
    %2 = vector.load %arg5[%c0_2, %c0_3] : memref<72x768xf32, #tpu.memory_space<vmem>>, vector<8x384xf32>
    tpu.vector_store %arg5[%c0_2, %c0_3], %1 {strides = array<i32>} : memref<72x768xf32, #tpu.memory_space<vmem>>, vector<8x384xf32>,
    %c0_4 = arith.constant 0 : index
    %c0_5 = arith.constant 0 : index
    %c1 = arith.constant 1 : index
    %3 = vector.load %arg0[%c0_4, %c0_5, %c1] : memref<2x8x456xf32, #tpu.memory_space<vmem>>, vector<1x8x384xf32>
    %4 = vector.shape_cast %3 : vector<1x8x384xf32> to vector<8x384xf32>
    %c8 = arith.constant 8 : index
    %c0_6 = arith.constant 0 : index
    %5 = vector.load %arg5[%c8, %c0_6] : memref<72x768xf32, #tpu.memory_space<vmem>>, vector<8x384xf32>
    tpu.vector_store %arg5[%c8, %c0_6], %4 {strides = array<i32>} : memref<72x768xf32, #tpu.memory_space<vmem>>, vector<8x384xf32>,
    %c0_7 = arith.constant 0 : index
    %c0_8 = arith.constant 0 : index
    %c2 = arith.constant 2 : index
    %6 = vector.load %arg0[%c0_7, %c0_8, %c2] : memref<2x8x456xf32, #tpu.memory_space<vmem>>, vector<1x8x384xf32>
    %7 = vector.shape_cast %6 : vector<1x8x384xf32> to vector<8x384xf32>
    %c16 = arith.constant 16 : index
    %c0_9 = arith.constant 0 : index
    %8 = vector.load %arg5[%c16, %c0_9] : memref<72x768xf32, #tpu.memory_space<vmem>>, vector<8x384xf32>
    tpu.vector_store %arg5[%c16, %c0_9], %7 {strides = array<i32>} : memref<72x768xf32, #tpu.memory_space<vmem>>, vector<8x384xf32>,
    %c0_10 = arith.constant 0 : index
    %c0_11 = arith.constant 0 : index
    %c24 = arith.constant 24 : index
    %9 = vector.load %arg0[%c0_10, %c0_11, %c24] : memref<2x8x456xf32, #tpu.memory_space<vmem>>, vector<1x8x384xf32>
    %10 = vector.shape_cast %9 : vector<1x8x384xf32> to vector<8x384xf32>
    %c24_12 = arith.constant 24 : index
    %c0_13 = arith.constant 0 : index
    %11 = vector.load %arg5[%c24_12, %c0_13] : memref<72x768xf32, #tpu.memory_space<vmem>>, vector<8x384xf32>
    tpu.vector_store %arg5[%c24_12, %c0_13], %10 {strides = array<i32>} : memref<72x768xf32, #tpu.memory_space<vmem>>, vector<8x384xf32>,
    %c0_14 = arith.constant 0 : index
    %c0_15 = arith.constant 0 : index
    %c25 = arith.constant 25 : index
    %12 = vector.load %arg0[%c0_14, %c0_15, %c25] : memref<2x8x456xf32, #tpu.memory_space<vmem>>, vector<1x8x384xf32>
    %13 = vector.shape_cast %12 : vector<1x8x384xf32> to vector<8x384xf32>
    %c32 = arith.constant 32 : index
    %c0_16 = arith.constant 0 : index
    %14 = vector.load %arg5[%c32, %c0_16] : memref<72x768xf32, #tpu.memory_space<vmem>>, vector<8x384xf32>
    tpu.vector_store %arg5[%c32, %c0_16], %13 {strides = array<i32>} : memref<72x768xf32, #tpu.memory_space<vmem>>, vector<8x384xf32>,
    %c0_17 = arith.constant 0 : index
    %c0_18 = arith.constant 0 : index
    %c26 = arith.constant 26 : index
    %15 = vector.load %arg0[%c0_17, %c0_18, %c26] : memref<2x8x456xf32, #tpu.memory_space<vmem>>, vector<1x8x384xf32>
    %16 = vector.shape_cast %15 : vector<1x8x384xf32> to vector<8x384xf32>
    %c40 = arith.constant 40 : index
    %c0_19 = arith.constant 0 : index
    %17 = vector.load %arg5[%c40, %c0_19] : memref<72x768xf32, #tpu.memory_space<vmem>>, vector<8x384xf32>
    tpu.vector_store %arg5[%c40, %c0_19], %16 {strides = array<i32>} : memref<72x768xf32, #tpu.memory_space<vmem>>, vector<8x384xf32>,
    %c0_20 = arith.constant 0 : index
    %c0_21 = arith.constant 0 : index
    %c48 = arith.constant 48 : index
    %18 = vector.load %arg0[%c0_20, %c0_21, %c48] : memref<2x8x456xf32, #tpu.memory_space<vmem>>, vector<1x8x384xf32>
    %19 = vector.shape_cast %18 : vector<1x8x384xf32> to vector<8x384xf32>
    %c48_22 = arith.constant 48 : index
    %c0_23 = arith.constant 0 : index
    %20 = vector.load %arg5[%c48_22, %c0_23] : memref<72x768xf32, #tpu.memory_space<vmem>>, vector<8x384xf32>
    tpu.vector_store %arg5[%c48_22, %c0_23], %19 {strides = array<i32>} : memref<72x768xf32, #tpu.memory_space<vmem>>, vector<8x384xf32>,
    %c0_24 = arith.constant 0 : index
    %c0_25 = arith.constant 0 : index
    %c49 = arith.constant 49 : index
    %21 = vector.load %arg0[%c0_24, %c0_25, %c49] : memref<2x8x456xf32, #tpu.memory_space<vmem>>, vector<1x8x384xf32>
    %22 = vector.shape_cast %21 : vector<1x8x384xf32> to vector<8x384xf32>
    %c56 = arith.constant 56 : index
    %c0_26 = arith.constant 0 : index
    %23 = vector.load %arg5[%c56, %c0_26] : memref<72x768xf32, #tpu.memory_space<vmem>>, vector<8x384xf32>
    tpu.vector_store %arg5[%c56, %c0_26], %22 {strides = array<i32>} : memref<72x768xf32, #tpu.memory_space<vmem>>, vector<8x384xf32>,
    %c0_27 = arith.constant 0 : index
    %c0_28 = arith.constant 0 : index
    %c50 = arith.constant 50 : index
    %24 = vector.load %arg0[%c0_27, %c0_28, %c50] : memref<2x8x456xf32, #tpu.memory_space<vmem>>, vector<1x8x384xf32>
    %25 = vector.shape_cast %24 : vector<1x8x384xf32> to vector<8x384xf32>
    %c64 = arith.constant 64 : index
    %c0_29 = arith.constant 0 : index
    %26 = vector.load %arg5[%c64, %c0_29] : memref<72x768xf32, #tpu.memory_space<vmem>>, vector<8x384xf32>
    tpu.vector_store %arg5[%c64, %c0_29], %25 {strides = array<i32>} : memref<72x768xf32, #tpu.memory_space<vmem>>, vector<8x384xf32>,
    %c1_30 = arith.constant 1 : index
    %c0_31 = arith.constant 0 : index
    %c0_32 = arith.constant 0 : index
    %27 = vector.load %arg0[%c1_30, %c0_31, %c0_32] : memref<2x8x456xf32, #tpu.memory_space<vmem>>, vector<1x8x384xf32>
    %28 = vector.shape_cast %27 : vector<1x8x384xf32> to vector<8x384xf32>
    %c0_33 = arith.constant 0 : index
    %c384 = arith.constant 384 : index
    %29 = vector.load %arg5[%c0_33, %c384] : memref<72x768xf32, #tpu.memory_space<vmem>>, vector<8x384xf32>
    tpu.vector_store %arg5[%c0_33, %c384], %28 {strides = array<i32>} : memref<72x768xf32, #tpu.memory_space<vmem>>, vector<8x384xf32>,
    %c1_34 = arith.constant 1 : index
    %c0_35 = arith.constant 0 : index
    %c1_36 = arith.constant 1 : index
    %30 = vector.load %arg0[%c1_34, %c0_35, %c1_36] : memref<2x8x456xf32, #tpu.memory_space<vmem>>, vector<1x8x384xf32>
    %31 = vector.shape_cast %30 : vector<1x8x384xf32> to vector<8x384xf32>
    %c8_37 = arith.constant 8 : index
    %c384_38 = arith.constant 384 : index
    %32 = vector.load %arg5[%c8_37, %c384_38] : memref<72x768xf32, #tpu.memory_space<vmem>>, vector<8x384xf32>
    tpu.vector_store %arg5[%c8_37, %c384_38], %31 {strides = array<i32>} : memref<72x768xf32, #tpu.memory_space<vmem>>, vector<8x384xf32>,
    %c1_39 = arith.constant 1 : index
    %c0_40 = arith.constant 0 : index
    %c2_41 = arith.constant 2 : index
    %33 = vector.load %arg0[%c1_39, %c0_40, %c2_41] : memref<2x8x456xf32, #tpu.memory_space<vmem>>, vector<1x8x384xf32>
    %34 = vector.shape_cast %33 : vector<1x8x384xf32> to vector<8x384xf32>
    %c16_42 = arith.constant 16 : index
    %c384_43 = arith.constant 384 : index
    %35 = vector.load %arg5[%c16_42, %c384_43] : memref<72x768xf32, #tpu.memory_space<vmem>>, vector<8x384xf32>
    tpu.vector_store %arg5[%c16_42, %c384_43], %34 {strides = array<i32>} : memref<72x768xf32, #tpu.memory_space<vmem>>, vector<8x384xf32>,
    %c1_44 = arith.constant 1 : index
    %c0_45 = arith.constant 0 : index
    %c24_46 = arith.constant 24 : index
    %36 = vector.load %arg0[%c1_44, %c0_45, %c24_46] : memref<2x8x456xf32, #tpu.memory_space<vmem>>, vector<1x8x384xf32>
    %37 = vector.shape_cast %36 : vector<1x8x384xf32> to vector<8x384xf32>
    %c24_47 = arith.constant 24 : index
    %c384_48 = arith.constant 384 : index
    %38 = vector.load %arg5[%c24_47, %c384_48] : memref<72x768xf32, #tpu.memory_space<vmem>>, vector<8x384xf32>
    tpu.vector_store %arg5[%c24_47, %c384_48], %37 {strides = array<i32>} : memref<72x768xf32, #tpu.memory_space<vmem>>, vector<8x384xf32>,
    %c1_49 = arith.constant 1 : index
    %c0_50 = arith.constant 0 : index
    %c25_51 = arith.constant 25 : index
    %39 = vector.load %arg0[%c1_49, %c0_50, %c25_51] : memref<2x8x456xf32, #tpu.memory_space<vmem>>, vector<1x8x384xf32>
    %40 = vector.shape_cast %39 : vector<1x8x384xf32> to vector<8x384xf32>
    %c32_52 = arith.constant 32 : index
    %c384_53 = arith.constant 384 : index
    %41 = vector.load %arg5[%c32_52, %c384_53] : memref<72x768xf32, #tpu.memory_space<vmem>>, vector<8x384xf32>
    tpu.vector_store %arg5[%c32_52, %c384_53], %40 {strides = array<i32>} : memref<72x768xf32, #tpu.memory_space<vmem>>, vector<8x384xf32>,
    %c1_54 = arith.constant 1 : index
    %c0_55 = arith.constant 0 : index
    %c26_56 = arith.constant 26 : index
    %42 = vector.load %arg0[%c1_54, %c0_55, %c26_56] : memref<2x8x456xf32, #tpu.memory_space<vmem>>, vector<1x8x384xf32>
    %43 = vector.shape_cast %42 : vector<1x8x384xf32> to vector<8x384xf32>
    %c40_57 = arith.constant 40 : index
    %c384_58 = arith.constant 384 : index
    %44 = vector.load %arg5[%c40_57, %c384_58] : memref<72x768xf32, #tpu.memory_space<vmem>>, vector<8x384xf32>
    tpu.vector_store %arg5[%c40_57, %c384_58], %43 {strides = array<i32>} : memref<72x768xf32, #tpu.memory_space<vmem>>, vector<8x384xf32>,
    %c1_59 = arith.constant 1 : index
    %c0_60 = arith.constant 0 : index
    %c48_61 = arith.constant 48 : index
    %45 = vector.load %arg0[%c1_59, %c0_60, %c48_61] : memref<2x8x456xf32, #tpu.memory_space<vmem>>, vector<1x8x384xf32>
    %46 = vector.shape_cast %45 : vector<1x8x384xf32> to vector<8x384xf32>
    %c48_62 = arith.constant 48 : index
    %c384_63 = arith.constant 384 : index
    %47 = vector.load %arg5[%c48_62, %c384_63] : memref<72x768xf32, #tpu.memory_space<vmem>>, vector<8x384xf32>
    tpu.vector_store %arg5[%c48_62, %c384_63], %46 {strides = array<i32>} : memref<72x768xf32, #tpu.memory_space<vmem>>, vector<8x384xf32>,
    %c1_64 = arith.constant 1 : index
    %c0_65 = arith.constant 0 : index
    %c49_66 = arith.constant 49 : index
    %48 = vector.load %arg0[%c1_64, %c0_65, %c49_66] : memref<2x8x456xf32, #tpu.memory_space<vmem>>, vector<1x8x384xf32>
    %49 = vector.shape_cast %48 : vector<1x8x384xf32> to vector<8x384xf32>
    %c56_67 = arith.constant 56 : index
    %c384_68 = arith.constant 384 : index
    %50 = vector.load %arg5[%c56_67, %c384_68] : memref<72x768xf32, #tpu.memory_space<vmem>>, vector<8x384xf32>
    tpu.vector_store %arg5[%c56_67, %c384_68], %49 {strides = array<i32>} : memref<72x768xf32, #tpu.memory_space<vmem>>, vector<8x384xf32>,
    %c1_69 = arith.constant 1 : index
    %c0_70 = arith.constant 0 : index
    %c50_71 = arith.constant 50 : index
    %51 = vector.load %arg0[%c1_69, %c0_70, %c50_71] : memref<2x8x456xf32, #tpu.memory_space<vmem>>, vector<1x8x384xf32>
    %52 = vector.shape_cast %51 : vector<1x8x384xf32> to vector<8x384xf32>
    %c64_72 = arith.constant 64 : index
    %c384_73 = arith.constant 384 : index
    %53 = vector.load %arg5[%c64_72, %c384_73] : memref<72x768xf32, #tpu.memory_space<vmem>>, vector<8x384xf32>
    tpu.vector_store %arg5[%c64_72, %c384_73], %52 {strides = array<i32>} : memref<72x768xf32, #tpu.memory_space<vmem>>, vector<8x384xf32>,
    %c0_74 = arith.constant 0 : index
    %c0_75 = arith.constant 0 : index
    %54 = vector.load %arg1[%c0_74, %c0_75] : memref<8x72xf32, #tpu.memory_space<vmem>>, vector<8x72xf32>
    %c0_76 = arith.constant 0 : index
    %c0_77 = arith.constant 0 : index
    %55 = vector.load %arg5[%c0_76, %c0_77] : memref<72x768xf32, #tpu.memory_space<vmem>>, vector<72x768xf32>
    %cst = arith.constant dense<0.000000e+00> : vector<8x768xf32>
    %56 = tpu.matmul %54, %55, %cst {dimension_numbers = #tpu.dot_dimension_numbers<[1], [0], [0], [1], [0, 0, 1, 1], [], []>} : vector<8x72xf32>, vector<72x768xf32>, vector<8x768xf32> -> vector<8x768xf32>
    %57 = tpu.iota {dimensions = array<i32: 1>} : vector<1x768xi32>
    %c24_i32 = arith.constant 24 : i32
    %c0_i32 = arith.constant 0 : i32
    %58 = arith.cmpi eq, %c24_i32, %c0_i32 : i32
    %c1_i32 = arith.constant 1 : i32
    %59 = arith.select %58, %c1_i32, %c24_i32 : i32
    %60 = vector.broadcast %59 : i32 to vector<1x768xi32>
    %61 = arith.remsi %57, %60 : vector<1x768xi32>
    %c0_i32_78 = arith.constant 0 : i32
    %62 = vector.broadcast %c0_i32_78 : i32 to vector<1x768xi32>
    %63 = arith.cmpi ne, %61, %62 : vector<1x768xi32>
    %c0_i32_79 = arith.constant 0 : i32
    %64 = vector.broadcast %c0_i32_79 : i32 to vector<1x768xi32>
    %65 = arith.cmpi slt, %61, %64 : vector<1x768xi32>
    %c0_i32_80 = arith.constant 0 : i32
    %66 = arith.cmpi slt, %59, %c0_i32_80 : i32
    %67 = vector.broadcast %66 : i1 to vector<1x768xi1>
    %68 = vector.broadcast %67 : vector<1x768xi1> to vector<1x768xi1>
    %69 = arith.xori %65, %68 : vector<1x768xi1>
    %70 = arith.andi %69, %63 : vector<1x768xi1>
    %71 = vector.broadcast %59 : i32 to vector<1x768xi32>
    %72 = arith.addi %61, %71 : vector<1x768xi32>
    %73 = arith.select %70, %72, %61 : vector<1x768xi1>, vector<1x768xi32>
    %c16_i32 = arith.constant 16 : i32
    %74 = vector.broadcast %c16_i32 : i32 to vector<1x768xi32>
    %75 = arith.cmpi slt, %73, %74 : vector<1x768xi32>
    %cst_81 = arith.constant 1.000000e+00 : f32
    %cst_82 = arith.constant 0.000000e+00 : f32
    %76 = vector.broadcast %cst_81 : f32 to vector<1x768xf32>
    %77 = vector.broadcast %cst_82 : f32 to vector<1x768xf32>
    %78 = arith.select %75, %76, %77 : vector<1x768xi1>, vector<1x768xf32>
    %79 = vector.broadcast %78 : vector<1x768xf32> to vector<8x768xf32>
    %80 = arith.mulf %56, %79 : vector<8x768xf32>
    %cst_83 = arith.constant dense<0.000000e+00> : vector<8xf32>
    %81 = vector.multi_reduction <add>, %80, %cst_83 [1] : vector<8x768xf32> to vector<8xf32>
    %82 = vector.shape_cast %81 : vector<8xf32> to vector<8x1xf32>
    %83 = arith.mulf %80, %56 : vector<8x768xf32>
    %cst_84 = arith.constant dense<0.000000e+00> : vector<8xf32>
    %84 = vector.multi_reduction <add>, %83, %cst_84 [1] : vector<8x768xf32> to vector<8xf32>
    %85 = vector.shape_cast %84 : vector<8xf32> to vector<8x1xf32>
    %cst_85 = arith.constant 0.001953125 : f32
    %86 = vector.broadcast %cst_85 : f32 to vector<8x1xf32>
    %87 = arith.mulf %82, %86 : vector<8x1xf32>
    %cst_86 = arith.constant 0.001953125 : f32
    %88 = vector.broadcast %cst_86 : f32 to vector<8x1xf32>
    %89 = arith.mulf %85, %88 : vector<8x1xf32>
    %90 = arith.mulf %87, %87 : vector<8x1xf32>
    %91 = arith.subf %89, %90 : vector<8x1xf32>
    %cst_87 = arith.constant 0.000000e+00 : f32
    %92 = vector.broadcast %cst_87 : f32 to vector<8x1xf32>
    %93 = arith.maximumf %91, %92 : vector<8x1xf32>
    %c0_88 = arith.constant 0 : index
    %c0_89 = arith.constant 0 : index
    %94 = vector.load %arg2[%c0_88, %c0_89] : memref<8x1xf32, #tpu.memory_space<vmem>>, vector<8x1xf32>
    %cst_90 = arith.constant 9.99999974E-6 : f32
    %95 = vector.broadcast %cst_90 : f32 to vector<8x1xf32>
    %96 = arith.addf %93, %95 : vector<8x1xf32>
    %97 = math.rsqrt %96 : vector<8x1xf32>
    %98 = arith.mulf %94, %97 : vector<8x1xf32>
    %c0_91 = arith.constant 0 : index
    %c0_92 = arith.constant 0 : index
    %99 = vector.load %arg3[%c0_91, %c0_92] : memref<8x1xf32, #tpu.memory_space<vmem>>, vector<8x1xf32>
    %100 = arith.mulf %87, %98 : vector<8x1xf32>
    %101 = arith.subf %99, %100 : vector<8x1xf32>
    %102 = vector.broadcast %98 : vector<8x1xf32> to vector<8x768xf32>
    %103 = arith.mulf %56, %102 : vector<8x768xf32>
    %104 = vector.broadcast %101 : vector<8x1xf32> to vector<8x768xf32>
    %105 = arith.addf %103, %104 : vector<8x768xf32>
    %cst_93 = arith.constant 0.000000e+00 : f32
    %106 = vector.broadcast %cst_93 : f32 to vector<8x768xf32>
    %107 = arith.subf %106, %105 : vector<8x768xf32>
    %108 = math.exp %107 : vector<8x768xf32>
    %cst_94 = arith.constant 1.000000e+00 : f32
    %109 = vector.broadcast %cst_94 : f32 to vector<8x768xf32>
    %110 = arith.addf %109, %108 : vector<8x768xf32>
    %111 = tpu.reciprocal %110 {approx = true} : vector<8x768xf32> -> vector<8x768xf32>
    %112 = arith.mulf %105, %111 : vector<8x768xf32>
    %113 = vector.extract_strided_slice %112 {offsets = [0, 0], sizes = [8, 384], strides = [1, 1]} : vector<8x768xf32> to vector<8x384xf32>
    %c0_95 = arith.constant 0 : index
    %c0_96 = arith.constant 0 : index
    %c0_97 = arith.constant 0 : index
    %114 = vector.load %arg4[%c0_95, %c0_96, %c0_97] : memref<2x8x384xf32, #tpu.memory_space<vmem>>, vector<1x8x384xf32>
    %115 = vector.shape_cast %114 : vector<1x8x384xf32> to vector<8x384xf32>
    %116 = vector.shape_cast %113 : vector<8x384xf32> to vector<1x8x384xf32>
    tpu.vector_store %arg4[%c0_95, %c0_96, %c0_97], %116 {strides = array<i32>} : memref<2x8x384xf32, #tpu.memory_space<vmem>>, vector<1x8x384xf32>,
    %117 = vector.extract_strided_slice %112 {offsets = [0, 384], sizes = [8, 384], strides = [1, 1]} : vector<8x768xf32> to vector<8x384xf32>
    %c1_98 = arith.constant 1 : index
    %c0_99 = arith.constant 0 : index
    %c0_100 = arith.constant 0 : index
    %118 = vector.load %arg4[%c1_98, %c0_99, %c0_100] : memref<2x8x384xf32, #tpu.memory_space<vmem>>, vector<1x8x384xf32>
    %119 = vector.shape_cast %118 : vector<1x8x384xf32> to vector<8x384xf32>
    %120 = vector.shape_cast %117 : vector<8x384xf32> to vector<1x8x384xf32>
    tpu.vector_store %arg4[%c1_98, %c0_99, %c0_100], %120 {strides = array<i32>} : memref<2x8x384xf32, #tpu.memory_space<vmem>>, vector<1x8x384xf32>,
    return
  }
}

</mosaic_0001>

<llo_original>
// kernel: tpu_custom_call.1
$region0: #{tpu_custom_call.1}
  #allocation0 [shape = 'u32[]', space=smem, size = 0x4, offset = 0x4, fixed_abs, tag = 'smem constant byte address 0x4 - core index']
  #allocation1 [shape = 'u32[144,128]{1,0:T(1,128)}', space=vmem, size = 0x12000, scoped, tag = 'internal scratch']
  #allocation2 [shape = 'f32[72,768]{1,0:T(8,128)}', space=vmem, size = 0x36000, scoped, tag = 'scratch operand']
  %s0 = inlined_call_operand.hbm [shape: f32[2,8,456], index: 0, kind: input, shape index: {}]
  %s1 = inlined_call_operand.vmem [shape: f32[8,72], index: 1, kind: input, shape index: {}]
  %s2 = inlined_call_operand.vmem [shape: f32[8,1], index: 2, kind: input, shape index: {}]
  %s3 = inlined_call_operand.vmem [shape: f32[8,1], index: 3, kind: input, shape index: {}]
  %s4 = inlined_call_operand.hbm [shape: f32[2,8,384], index: 4, kind: output, shape index: {}]
  %s5 = sld [smem:[#allocation0]]
  $region30: #{tpu_custom_call.1} parent=0
    _
  %s7 = ssub.s32 1, %s5
  %s8 = scalar_select 0, %s7, %s5
  $region1: #{tpu_custom_call.1} parent=0
    #allocation3 [shape = 'u8[32768]{0}', space=vmem, size = 0x8000, scoped, tag = 'input window, operand 0, single buffered']
    #allocation4 [shape = 's32[1]{0}', space=sflag, size = 0x4, scoped, tag = 'scoped memory for tpu_custom_call.1']
    #allocation5 [shape = 's32[1]{0}', space=sflag, size = 0x4, scoped, tag = 'scoped memory for tpu_custom_call.1']
    #allocation6 [shape = 'u8[24576]{0}', space=vmem, size = 0x6000, scoped, tag = 'output window, operand 0, single buffered']
    %9 = vsyncpa [#allocation4], 0
    %10 = vsyncpa [#allocation5], 0
    // Predicated region
    $region2: #{tpu_custom_call.1} parent=1 // pred_check
      _
    $region3: #{tpu_custom_call.1} parent=1 // pred_check_branch
      %12 = sbr.rel (0) target = $region5
    $region4: #{tpu_custom_call.1} parent=1 // pred_region
      %s14 = ssub.s32 1024, 1024
      %15 = vsyncadd [#allocation4], %s14
      %s16 = sshll.u32 [#allocation3], 4
      %s17 = int_to_ptr.vmem [resolvable:$true] %s16
      %22 = dma.hbm_to_vmem [thread:$0]  %s0, 1024, %s17, [#allocation4], 512, 512, 32
    $region5: #{tpu_custom_call.1} parent=1 // pred_fallthru
      _
    // Predicated region
    $region6: #{tpu_custom_call.1} parent=1 // pred_check
      _
    $region7: #{tpu_custom_call.1} parent=1 // pred_check_branch
      %24 = sbr.rel (0) target = $region9
    $region8: #{tpu_custom_call.1} parent=1 // pred_region
      _
    $region9: #{tpu_custom_call.1} parent=1 // pred_fallthru
      _
    // Predicated region
    $region10: #{tpu_custom_call.1} parent=1 // pred_check
      _
    $region11: #{tpu_custom_call.1} parent=1 // pred_check_branch
      %26 = sbr.rel (0) target = $region13
    $region12: #{tpu_custom_call.1} parent=1 // pred_region
      _
    $region13: #{tpu_custom_call.1} parent=1 // pred_fallthru
      _
    // Predicated region
    $region14: #{tpu_custom_call.1} parent=1 // pred_check
      _
    $region15: #{tpu_custom_call.1} parent=1 // pred_check_branch
      %28 = sbr.rel (0) target = $region17
    $region16: #{tpu_custom_call.1} parent=1 // pred_region
      _
    $region17: #{tpu_custom_call.1} parent=1 // pred_fallthru
      _
    // Predicated region
    $region18: #{tpu_custom_call.1} parent=1 // pred_check
      _
    $region19: #{tpu_custom_call.1} parent=1 // pred_check_branch
      %30 = sbr.rel (0) target = $region21
    $region20: #{tpu_custom_call.1} parent=1 // pred_region
      %31 = dma.done [#allocation4], 1024
    $region21: #{tpu_custom_call.1} parent=1 // pred_fallthru
      _
    %v32 = vld [vmem:[#allocation3] sm:$0xff]
    %v33 = vld [vmem:[#allocation3 + $0x8] sm:$0xff]
    %v34 = vld [vmem:[#allocation3 + $0x10] sm:$0xff]
    %35 = vst [vmem:[#allocation2] sm:$0xff] %v32
    %36 = vst [vmem:[#allocation2 + $0x8] sm:$0xff] %v33
    %37 = vst [vmem:[#allocation2 + $0x10] sm:$0xff] %v34
    %v38 = vld [vmem:[#allocation3] sm:$0xff]
    %v39 = vld [vmem:[#allocation3 + $0x8] sm:$0xff]
    %v40 = vld [vmem:[#allocation3 + $0x10] sm:$0xff]
    %v41 = vld [vmem:[#allocation3 + $0x18] sm:$0xff]
    %46 = vrot.lane.b32.xlu0 %v38, 127
    %v47 = vpop.permute.xlu0 %46
    %48 = vrot.lane.b32.xlu0 %v39, 127
    %v49 = vpop.permute.xlu0 %48
    %50 = vrot.lane.b32.xlu0 %v40, 127
    %v51 = vpop.permute.xlu0 %50
    %52 = vrot.lane.b32.xlu0 %v41, 127
    %v53 = vpop.permute.xlu0 %52
    %vm54 = vcmask 1039360
    %v55 = vsel %vm54, %v47, %v49
    %v56 = vsel %vm54, %v49, %v51
    %v57 = vsel %vm54, %v51, %v53
    %61 = vst [vmem:[#allocation2 + $0x30] sm:$0xff] %v55
    %62 = vst [vmem:[#allocation2 + $0x38] sm:$0xff] %v56
    %63 = vst [vmem:[#allocation2 + $0x40] sm:$0xff] %v57
    %v64 = vld [vmem:[#allocation3] sm:$0xff]
    %v65 = vld [vmem:[#allocation3 + $0x8] sm:$0xff]
    %v66 = vld [vmem:[#allocation3 + $0x10] sm:$0xff]
    %v67 = vld [vmem:[#allocation3 + $0x18] sm:$0xff]
    %72 = vrot.lane.b32.xlu0 %v64, 126
    %v73 = vpop.permute.xlu0 %72
    %74 = vrot.lane.b32.xlu0 %v65, 126
    %v75 = vpop.permute.xlu0 %74
    %76 = vrot.lane.b32.xlu0 %v66, 126
    %v77 = vpop.permute.xlu0 %76
    %78 = vrot.lane.b32.xlu0 %v67, 126
    %v79 = vpop.permute.xlu0 %78
    %vm80 = vcmask 1031168
    %v81 = vsel %vm80, %v73, %v75
    %v82 = vsel %vm80, %v75, %v77
    %v83 = vsel %vm80, %v77, %v79
    %87 = vst [vmem:[#allocation2 + $0x60] sm:$0xff] %v81
    %88 = vst [vmem:[#allocation2 + $0x68] sm:$0xff] %v82
    %89 = vst [vmem:[#allocation2 + $0x70] sm:$0xff] %v83
    %v90 = vld [vmem:[#allocation3] sm:$0xff]
    %v91 = vld [vmem:[#allocation3 + $0x8] sm:$0xff]
    %v92 = vld [vmem:[#allocation3 + $0x10] sm:$0xff]
    %v93 = vld [vmem:[#allocation3 + $0x18] sm:$0xff]
    %98 = vrot.lane.b32.xlu0 %v90, 104
    %v99 = vpop.permute.xlu0 %98
    %100 = vrot.lane.b32.xlu0 %v91, 104
    %v101 = vpop.permute.xlu0 %100
    %102 = vrot.lane.b32.xlu0 %v92, 104
    %v103 = vpop.permute.xlu0 %102
    %104 = vrot.lane.b32.xlu0 %v93, 104
    %v105 = vpop.permute.xlu0 %104
    %vm106 = vcmask 850944
    %v107 = vsel %vm106, %v99, %v101
    %v108 = vsel %vm106, %v101, %v103
    %v109 = vsel %vm106, %v103, %v105
    %113 = vst [vmem:[#allocation2 + $0x90] sm:$0xff] %v107
    %114 = vst [vmem:[#allocation2 + $0x98] sm:$0xff] %v108
    %115 = vst [vmem:[#allocation2 + $0xa0] sm:$0xff] %v109
    %v116 = vld [vmem:[#allocation3] sm:$0xff]
    %v117 = vld [vmem:[#allocation3 + $0x8] sm:$0xff]
    %v118 = vld [vmem:[#allocation3 + $0x10] sm:$0xff]
    %v119 = vld [vmem:[#allocation3 + $0x18] sm:$0xff]
    %124 = vrot.lane.b32.xlu0 %v116, 103
    %v125 = vpop.permute.xlu0 %124
    %126 = vrot.lane.b32.xlu0 %v117, 103
    %v127 = vpop.permute.xlu0 %126
    %128 = vrot.lane.b32.xlu0 %v118, 103
    %v129 = vpop.permute.xlu0 %128
    %130 = vrot.lane.b32.xlu0 %v119, 103
    %v131 = vpop.permute.xlu0 %130
    %vm132 = vcmask 842752
    %v133 = vsel %vm132, %v125, %v127
    %v134 = vsel %vm132, %v127, %v129
    %v135 = vsel %vm132, %v129, %v131
    %139 = vst [vmem:[#allocation2 + $0xc0] sm:$0xff] %v133
    %140 = vst [vmem:[#allocation2 + $0xc8] sm:$0xff] %v134
    %141 = vst [vmem:[#allocation2 + $0xd0] sm:$0xff] %v135
    %v142 = vld [vmem:[#allocation3] sm:$0xff]
    %v143 = vld [vmem:[#allocation3 + $0x8] sm:$0xff]
    %v144 = vld [vmem:[#allocation3 + $0x10] sm:$0xff]
    %v145 = vld [vmem:[#allocation3 + $0x18] sm:$0xff]
    %150 = vrot.lane.b32.xlu0 %v142, 102
    %v151 = vpop.permute.xlu0 %150
    %152 = vrot.lane.b32.xlu0 %v143, 102
    %v153 = vpop.permute.xlu0 %152
    %154 = vrot.lane.b32.xlu0 %v144, 102
    %v155 = vpop.permute.xlu0 %154
    %156 = vrot.lane.b32.xlu0 %v145, 102
    %v157 = vpop.permute.xlu0 %156
    %vm158 = vcmask 834560
    %v159 = vsel %vm158, %v151, %v153
    %v160 = vsel %vm158, %v153, %v155
    %v161 = vsel %vm158, %v155, %v157
    %165 = vst [vmem:[#allocation2 + $0xf0] sm:$0xff] %v159
    %166 = vst [vmem:[#allocation2 + $0xf8] sm:$0xff] %v160
    %167 = vst [vmem:[#allocation2 + $0x100] sm:$0xff] %v161
    %v168 = vld [vmem:[#allocation3] sm:$0xff]
    %v169 = vld [vmem:[#allocation3 + $0x8] sm:$0xff]
    %v170 = vld [vmem:[#allocation3 + $0x10] sm:$0xff]
    %v171 = vld [vmem:[#allocation3 + $0x18] sm:$0xff]
    %176 = vrot.lane.b32.xlu0 %v168, 80
    %v177 = vpop.permute.xlu0 %176
    %178 = vrot.lane.b32.xlu0 %v169, 80
    %v179 = vpop.permute.xlu0 %178
    %180 = vrot.lane.b32.xlu0 %v170, 80
    %v181 = vpop.permute.xlu0 %180
    %182 = vrot.lane.b32.xlu0 %v171, 80
    %v183 = vpop.permute.xlu0 %182
    %vm184 = vcmask 654336
    %v185 = vsel %vm184, %v177, %v179
    %v186 = vsel %vm184, %v179, %v181
    %v187 = vsel %vm184, %v181, %v183
    %191 = vst [vmem:[#allocation2 + $0x120] sm:$0xff] %v185
    %192 = vst [vmem:[#allocation2 + $0x128] sm:$0xff] %v186
    %193 = vst [vmem:[#allocation2 + $0x130] sm:$0xff] %v187
    %v194 = vld [vmem:[#allocation3] sm:$0xff]
    %v195 = vld [vmem:[#allocation3 + $0x8] sm:$0xff]
    %v196 = vld [vmem:[#allocation3 + $0x10] sm:$0xff]
    %v197 = vld [vmem:[#allocation3 + $0x18] sm:$0xff]
    %202 = vrot.lane.b32.xlu0 %v194, 79
    %v203 = vpop.permute.xlu0 %202
    %204 = vrot.lane.b32.xlu0 %v195, 79
    %v205 = vpop.permute.xlu0 %204
    %206 = vrot.lane.b32.xlu0 %v196, 79
    %v207 = vpop.permute.xlu0 %206
    %208 = vrot.lane.b32.xlu0 %v197, 79
    %v209 = vpop.permute.xlu0 %208
    %vm210 = vcmask 646144
    %v211 = vsel %vm210, %v203, %v205
    %v212 = vsel %vm210, %v205, %v207
    %v213 = vsel %vm210, %v207, %v209
    %217 = vst [vmem:[#allocation2 + $0x150] sm:$0xff] %v211
    %218 = vst [vmem:[#allocation2 + $0x158] sm:$0xff] %v212
    %219 = vst [vmem:[#allocation2 + $0x160] sm:$0xff] %v213
    %v220 = vld [vmem:[#allocation3] sm:$0xff]
    %v221 = vld [vmem:[#allocation3 + $0x8] sm:$0xff]
    %v222 = vld [vmem:[#allocation3 + $0x10] sm:$0xff]
    %v223 = vld [vmem:[#allocation3 + $0x18] sm:$0xff]
    %228 = vrot.lane.b32.xlu0 %v220, 78
    %v229 = vpop.permute.xlu0 %228
    %230 = vrot.lane.b32.xlu0 %v221, 78
    %v231 = vpop.permute.xlu0 %230
    %232 = vrot.lane.b32.xlu0 %v222, 78
    %v233 = vpop.permute.xlu0 %232
    %234 = vrot.lane.b32.xlu0 %v223, 78
    %v235 = vpop.permute.xlu0 %234
    %vm236 = vcmask 637952
    %v237 = vsel %vm236, %v229, %v231
    %v238 = vsel %vm236, %v231, %v233
    %v239 = vsel %vm236, %v233, %v235
    %243 = vst [vmem:[#allocation2 + $0x180] sm:$0xff] %v237
    %244 = vst [vmem:[#allocation2 + $0x188] sm:$0xff] %v238
    %245 = vst [vmem:[#allocation2 + $0x190] sm:$0xff] %v239
    %s246 = scalar_lea.vmem [#allocation3], 32
    %v247 = vld [vmem:[%s246] sm:$0xff]
    %v248 = vld [vmem:[%s246 + $0x8] sm:$0xff]
    %v249 = vld [vmem:[%s246 + $0x10] sm:$0xff]
    %250 = vst [vmem:[#allocation2 + $0x18] sm:$0xff] %v247
    %251 = vst [vmem:[#allocation2 + $0x20] sm:$0xff] %v248
    %252 = vst [vmem:[#allocation2 + $0x28] sm:$0xff] %v249
    %v253 = vld [vmem:[%s246] sm:$0xff]
    %v254 = vld [vmem:[%s246 + $0x8] sm:$0xff]
    %v255 = vld [vmem:[%s246 + $0x10] sm:$0xff]
    %v256 = vld [vmem:[%s246 + $0x18] sm:$0xff]
    %261 = vrot.lane.b32.xlu0 %v253, 127
    %v262 = vpop.permute.xlu0 %261
    %263 = vrot.lane.b32.xlu0 %v254, 127
    %v264 = vpop.permute.xlu0 %263
    %265 = vrot.lane.b32.xlu0 %v255, 127
    %v266 = vpop.permute.xlu0 %265
    %267 = vrot.lane.b32.xlu0 %v256, 127
    %v268 = vpop.permute.xlu0 %267
    %v269 = vsel %vm54, %v262, %v264
    %v270 = vsel %vm54, %v264, %v266
    %v271 = vsel %vm54, %v266, %v268
    %275 = vst [vmem:[#allocation2 + $0x48] sm:$0xff] %v269
    %276 = vst [vmem:[#allocation2 + $0x50] sm:$0xff] %v270
    %277 = vst [vmem:[#allocation2 + $0x58] sm:$0xff] %v271
    %v278 = vld [vmem:[%s246] sm:$0xff]
    %v279 = vld [vmem:[%s246 + $0x8] sm:$0xff]
    %v280 = vld [vmem:[%s246 + $0x10] sm:$0xff]
    %v281 = vld [vmem:[%s246 + $0x18] sm:$0xff]
    %286 = vrot.lane.b32.xlu0 %v278, 126
    %v287 = vpop.permute.xlu0 %286
    %288 = vrot.lane.b32.xlu0 %v279, 126
    %v289 = vpop.permute.xlu0 %288
    %290 = vrot.lane.b32.xlu0 %v280, 126
    %v291 = vpop.permute.xlu0 %290
    %292 = vrot.lane.b32.xlu0 %v281, 126
    %v293 = vpop.permute.xlu0 %292
    %v294 = vsel %vm80, %v287, %v289
    %v295 = vsel %vm80, %v289, %v291
    %v296 = vsel %vm80, %v291, %v293
    %300 = vst [vmem:[#allocation2 + $0x78] sm:$0xff] %v294
    %301 = vst [vmem:[#allocation2 + $0x80] sm:$0xff] %v295
    %302 = vst [vmem:[#allocation2 + $0x88] sm:$0xff] %v296
    %v303 = vld [vmem:[%s246] sm:$0xff]
    %v304 = vld [vmem:[%s246 + $0x8] sm:$0xff]
    %v305 = vld [vmem:[%s246 + $0x10] sm:$0xff]
    %v306 = vld [vmem:[%s246 + $0x18] sm:$0xff]
    %311 = vrot.lane.b32.xlu0 %v303, 104
    %v312 = vpop.permute.xlu0 %311
    %313 = vrot.lane.b32.xlu0 %v304, 104
    %v314 = vpop.permute.xlu0 %313
    %315 = vrot.lane.b32.xlu0 %v305, 104
    %v316 = vpop.permute.xlu0 %315
    %317 = vrot.lane.b32.xlu0 %v306, 104
    %v318 = vpop.permute.xlu0 %317
    %v319 = vsel %vm106, %v312, %v314
    %v320 = vsel %vm106, %v314, %v316
    %v321 = vsel %vm106, %v316, %v318
    %325 = vst [vmem:[#allocation2 + $0xa8] sm:$0xff] %v319
    %326 = vst [vmem:[#allocation2 + $0xb0] sm:$0xff] %v320
    %327 = vst [vmem:[#allocation2 + $0xb8] sm:$0xff] %v321
    %v328 = vld [vmem:[%s246] sm:$0xff]
    %v329 = vld [vmem:[%s246 + $0x8] sm:$0xff]
    %v330 = vld [vmem:[%s246 + $0x10] sm:$0xff]
    %v331 = vld [vmem:[%s246 + $0x18] sm:$0xff]
    %336 = vrot.lane.b32.xlu0 %v328, 103
    %v337 = vpop.permute.xlu0 %336
    %338 = vrot.lane.b32.xlu0 %v329, 103
    %v339 = vpop.permute.xlu0 %338
    %340 = vrot.lane.b32.xlu0 %v330, 103
    %v341 = vpop.permute.xlu0 %340
    %342 = vrot.lane.b32.xlu0 %v331, 103
    %v343 = vpop.permute.xlu0 %342
    %v344 = vsel %vm132, %v337, %v339
    %v345 = vsel %vm132, %v339, %v341
    %v346 = vsel %vm132, %v341, %v343
    %350 = vst [vmem:[#allocation2 + $0xd8] sm:$0xff] %v344
    %351 = vst [vmem:[#allocation2 + $0xe0] sm:$0xff] %v345
    %352 = vst [vmem:[#allocation2 + $0xe8] sm:$0xff] %v346
    %v353 = vld [vmem:[%s246] sm:$0xff]
    %v354 = vld [vmem:[%s246 + $0x8] sm:$0xff]
    %v355 = vld [vmem:[%s246 + $0x10] sm:$0xff]
    %v356 = vld [vmem:[%s246 + $0x18] sm:$0xff]
    %361 = vrot.lane.b32.xlu0 %v353, 102
    %v362 = vpop.permute.xlu0 %361
    %363 = vrot.lane.b32.xlu0 %v354, 102
    %v364 = vpop.permute.xlu0 %363
    %365 = vrot.lane.b32.xlu0 %v355, 102
    %v366 = vpop.permute.xlu0 %365
    %367 = vrot.lane.b32.xlu0 %v356, 102
    %v368 = vpop.permute.xlu0 %367
    %v369 = vsel %vm158, %v362, %v364
    %v370 = vsel %vm158, %v364, %v366
    %v371 = vsel %vm158, %v366, %v368
    %375 = vst [vmem:[#allocation2 + $0x108] sm:$0xff] %v369
    %376 = vst [vmem:[#allocation2 + $0x110] sm:$0xff] %v370
    %377 = vst [vmem:[#allocation2 + $0x118] sm:$0xff] %v371
    %v378 = vld [vmem:[%s246] sm:$0xff]
    %v379 = vld [vmem:[%s246 + $0x8] sm:$0xff]
    %v380 = vld [vmem:[%s246 + $0x10] sm:$0xff]
    %v381 = vld [vmem:[%s246 + $0x18] sm:$0xff]
    %386 = vrot.lane.b32.xlu0 %v378, 80
    %v387 = vpop.permute.xlu0 %386
    %388 = vrot.lane.b32.xlu0 %v379, 80
    %v389 = vpop.permute.xlu0 %388
    %390 = vrot.lane.b32.xlu0 %v380, 80
    %v391 = vpop.permute.xlu0 %390
    %392 = vrot.lane.b32.xlu0 %v381, 80
    %v393 = vpop.permute.xlu0 %392
    %v394 = vsel %vm184, %v387, %v389
    %v395 = vsel %vm184, %v389, %v391
    %v396 = vsel %vm184, %v391, %v393
    %400 = vst [vmem:[#allocation2 + $0x138] sm:$0xff] %v394
    %401 = vst [vmem:[#allocation2 + $0x140] sm:$0xff] %v395
    %402 = vst [vmem:[#allocation2 + $0x148] sm:$0xff] %v396
    %v403 = vld [vmem:[%s246] sm:$0xff]
    %v404 = vld [vmem:[%s246 + $0x8] sm:$0xff]
    %v405 = vld [vmem:[%s246 + $0x10] sm:$0xff]
    %v406 = vld [vmem:[%s246 + $0x18] sm:$0xff]
    %411 = vrot.lane.b32.xlu0 %v403, 79
    %v412 = vpop.permute.xlu0 %411
    %413 = vrot.lane.b32.xlu0 %v404, 79
    %v414 = vpop.permute.xlu0 %413
    %415 = vrot.lane.b32.xlu0 %v405, 79
    %v416 = vpop.permute.xlu0 %415
    %417 = vrot.lane.b32.xlu0 %v406, 79
    %v418 = vpop.permute.xlu0 %417
    %v419 = vsel %vm210, %v412, %v414
    %v420 = vsel %vm210, %v414, %v416
    %v421 = vsel %vm210, %v416, %v418
    %425 = vst [vmem:[#allocation2 + $0x168] sm:$0xff] %v419
    %426 = vst [vmem:[#allocation2 + $0x170] sm:$0xff] %v420
    %427 = vst [vmem:[#allocation2 + $0x178] sm:$0xff] %v421
    %v428 = vld [vmem:[%s246] sm:$0xff]
    %v429 = vld [vmem:[%s246 + $0x8] sm:$0xff]
    %v430 = vld [vmem:[%s246 + $0x10] sm:$0xff]
    %v431 = vld [vmem:[%s246 + $0x18] sm:$0xff]
    %436 = vrot.lane.b32.xlu0 %v428, 78
    %v437 = vpop.permute.xlu0 %436
    %438 = vrot.lane.b32.xlu0 %v429, 78
    %v439 = vpop.permute.xlu0 %438
    %440 = vrot.lane.b32.xlu0 %v430, 78
    %v441 = vpop.permute.xlu0 %440
    %442 = vrot.lane.b32.xlu0 %v431, 78
    %v443 = vpop.permute.xlu0 %442
    %v444 = vsel %vm236, %v437, %v439
    %v445 = vsel %vm236, %v439, %v441
    %v446 = vsel %vm236, %v441, %v443
    %450 = vst [vmem:[#allocation2 + $0x198] sm:$0xff] %v444
    %451 = vst [vmem:[#allocation2 + $0x1a0] sm:$0xff] %v445
    %452 = vst [vmem:[#allocation2 + $0x1a8] sm:$0xff] %v446
    %v453 = vld [vmem:[%s1] sm:$0xff]
    %v454 = vld [vmem:[#allocation2] sm:$0xff]
    %v455 = vld [vmem:[#allocation2 + $0x8] sm:$0xff]
    %v456 = vld [vmem:[#allocation2 + $0x10] sm:$0xff]
    %v457 = vld [vmem:[#allocation2 + $0x18] sm:$0xff]
    %v458 = vld [vmem:[#allocation2 + $0x20] sm:$0xff]
    %v459 = vld [vmem:[#allocation2 + $0x28] sm:$0xff]
    %v460 = vld [vmem:[#allocation2 + $0x30] sm:$0xff]
    %v461 = vld [vmem:[#allocation2 + $0x38] sm:$0xff]
    %v462 = vld [vmem:[#allocation2 + $0x40] sm:$0xff]
    %v463 = vld [vmem:[#allocation2 + $0x48] sm:$0xff]
    %v464 = vld [vmem:[#allocation2 + $0x50] sm:$0xff]
    %v465 = vld [vmem:[#allocation2 + $0x58] sm:$0xff]
    %v466 = vld [vmem:[#allocation2 + $0x60] sm:$0xff]
    %v467 = vld [vmem:[#allocation2 + $0x68] sm:$0xff]
    %v468 = vld [vmem:[#allocation2 + $0x70] sm:$0xff]
    %v469 = vld [vmem:[#allocation2 + $0x78] sm:$0xff]
    %v470 = vld [vmem:[#allocation2 + $0x80] sm:$0xff]
    %v471 = vld [vmem:[#allocation2 + $0x88] sm:$0xff]
    %v472 = vld [vmem:[#allocation2 + $0x90] sm:$0xff]
    %v473 = vld [vmem:[#allocation2 + $0x98] sm:$0xff]
    %v474 = vld [vmem:[#allocation2 + $0xa0] sm:$0xff]
    %v475 = vld [vmem:[#allocation2 + $0xa8] sm:$0xff]
    %v476 = vld [vmem:[#allocation2 + $0xb0] sm:$0xff]
    %v477 = vld [vmem:[#allocation2 + $0xb8] sm:$0xff]
    %v478 = vld [vmem:[#allocation2 + $0xc0] sm:$0xff]
    %v479 = vld [vmem:[#allocation2 + $0xc8] sm:$0xff]
    %v480 = vld [vmem:[#allocation2 + $0xd0] sm:$0xff]
    %v481 = vld [vmem:[#allocation2 + $0xd8] sm:$0xff]
    %v482 = vld [vmem:[#allocation2 + $0xe0] sm:$0xff]
    %v483 = vld [vmem:[#allocation2 + $0xe8] sm:$0xff]
    %v484 = vld [vmem:[#allocation2 + $0xf0] sm:$0xff]
    %v485 = vld [vmem:[#allocation2 + $0xf8] sm:$0xff]
    %v486 = vld [vmem:[#allocation2 + $0x100] sm:$0xff]
    %v487 = vld [vmem:[#allocation2 + $0x108] sm:$0xff]
    %v488 = vld [vmem:[#allocation2 + $0x110] sm:$0xff]
    %v489 = vld [vmem:[#allocation2 + $0x118] sm:$0xff]
    %v490 = vld [vmem:[#allocation2 + $0x120] sm:$0xff]
    %v491 = vld [vmem:[#allocation2 + $0x128] sm:$0xff]
    %v492 = vld [vmem:[#allocation2 + $0x130] sm:$0xff]
    %v493 = vld [vmem:[#allocation2 + $0x138] sm:$0xff]
    %v494 = vld [vmem:[#allocation2 + $0x140] sm:$0xff]
    %v495 = vld [vmem:[#allocation2 + $0x148] sm:$0xff]
    %v496 = vld [vmem:[#allocation2 + $0x150] sm:$0xff]
    %v497 = vld [vmem:[#allocation2 + $0x158] sm:$0xff]
    %v498 = vld [vmem:[#allocation2 + $0x160] sm:$0xff]
    %v499 = vld [vmem:[#allocation2 + $0x168] sm:$0xff]
    %v500 = vld [vmem:[#allocation2 + $0x170] sm:$0xff]
    %v501 = vld [vmem:[#allocation2 + $0x178] sm:$0xff]
    %v502 = vld [vmem:[#allocation2 + $0x180] sm:$0xff]
    %v503 = vld [vmem:[#allocation2 + $0x188] sm:$0xff]
    %v504 = vld [vmem:[#allocation2 + $0x190] sm:$0xff]
    %v505 = vld [vmem:[#allocation2 + $0x198] sm:$0xff]
    %v506 = vld [vmem:[#allocation2 + $0x1a0] sm:$0xff]
    %v507 = vld [vmem:[#allocation2 + $0x1a8] sm:$0xff]
    %vm508 = vcmask 588800
    %v510 = vsel %vm508, %v453, 0
    %512 = vmatprep.subr.mxu0 %v455
    %513 = vmatpush1.msra.mxu0 %v454
    %514 = vmatprep.subr.mxu0 %v461
    %515 = vmatpush1.msra.mxu0 %v460
    %516 = vmatprep.subr.mxu0 %v467
    %517 = vmatpush1.msra.mxu0 %v466
    %518 = vmatprep.subr.mxu0 %v473
    %519 = vmatpush1.msra.mxu0 %v472
    %520 = vmatprep.subr.mxu0 %v479
    %521 = vmatpush1.msra.mxu0 %v478
    %522 = vmatprep.subr.mxu0 %v485
    %523 = vmatpush1.msra.mxu0 %v484
    %524 = vmatprep.subr.mxu0 %v491
    %525 = vmatpush1.msra.mxu0 %v490
    %526 = vmatprep.subr.mxu0 %v497
    %527 = vmatpush1.msra.mxu0 %v496
    %528 = vmatprep.subr.mxu0 %v503
    %529 = vmatpush1.msra.mxu0 %v502
    %530 = vmatprep.subr.mxu0 0.0
    %531 = vmatpush1.msra.mxu0 0.0
    %532 = vmatprep.subr.mxu0 0.0
    %533 = vmatpush1.msra.mxu0 0.0
    %534 = vmatprep.subr.mxu0 0.0
    %535 = vmatpush1.msra.mxu0 0.0
    %536 = vmatprep.subr.mxu0 0.0
    %537 = vmatpush1.msra.mxu0 0.0
    %538 = vmatprep.subr.mxu0 0.0
    %539 = vmatpush1.msra.mxu0 0.0
    %540 = vmatprep.subr.mxu0 0.0
    %541 = vmatpush1.msra.mxu0 0.0
    %542 = vmatprep.subr.mxu0 0.0
    %543 = vmatpush1.msra.mxu0 0.0
    %544 = vmatprep.subr.mxu0 0.0
    %545 = vmatpush1.msra.mxu0 0.0
    %546 = vmatprep.subr.mxu0 0.0
    %547 = vmatpush1.msra.mxu0 0.0
    %548 = vmatprep.subr.mxu0 0.0
    %549 = vmatpush1.msra.mxu0 0.0
    %550 = vmatprep.subr.mxu0 0.0
    %551 = vmatpush1.msra.mxu0 0.0
    %552 = vmatprep.subr.mxu0 0.0
    %553 = vmatpush1.msra.mxu0 0.0
    %554 = vmatprep.subr.mxu0 0.0
    %555 = vmatpush1.msra.mxu0 0.0
    %556 = vmatprep.subr.mxu0 0.0
    %557 = vmatpush1.msra.mxu0 0.0
    %558 = vmatprep.subr.mxu0 0.0
    %559 = vmatpush1.msra.mxu0 0.0
    %560 = vmatprep.subr.mxu0 0.0
    %561 = vmatpush1.msra.mxu0 0.0
    %562 = vmatprep.subr.mxu0 0.0
    %563 = vmatpush1.msra.mxu0 0.0
    %564 = vmatprep.subr.mxu0 0.0
    %565 = vmatpush1.msra.mxu0 0.0
    %566 = vmatprep.subr.mxu0 0.0
    %567 = vmatpush1.msra.mxu0 0.0
    %568 = vmatprep.subr.mxu0 0.0
    %569 = vmatpush1.msra.mxu0 0.0
    %570 = vmatprep.subr.mxu0 0.0
    %571 = vmatpush1.msra.mxu0 0.0
    %572 = vmatprep.subr.mxu0 0.0
    %573 = vmatpush1.msra.mxu0 0.0
    %574 = vmatprep.subr.mxu0 0.0
    %575 = vmatpush1.msra.mxu0 0.0
    %576 = vmatprep.mubr.f32.mxu0 0.0
    %577 = vmatmul.mubr.f32.gmra.mrb[0].mxu0 %v510
    %v578 = vpop.f32.mrb[0].mxu0
    %v579 = vadd.f32 0.0, %v578
    %v580 = vpop.f32.mrb[0].mxu0
    %v581 = vadd.f32 0.0, %v580
    %582 = vdwg.mxu0
    %583 = vmatprep.subr.mxu0 %v457
    %584 = vmatpush1.msra.mxu0 %v456
    %585 = vmatprep.subr.mxu0 %v463
    %586 = vmatpush1.msra.mxu0 %v462
    %587 = vmatprep.subr.mxu0 %v469
    %588 = vmatpush1.msra.mxu0 %v468
    %589 = vmatprep.subr.mxu0 %v475
    %590 = vmatpush1.msra.mxu0 %v474
    %591 = vmatprep.subr.mxu0 %v481
    %592 = vmatpush1.msra.mxu0 %v480
    %593 = vmatprep.subr.mxu0 %v487
    %594 = vmatpush1.msra.mxu0 %v486
    %595 = vmatprep.subr.mxu0 %v493
    %596 = vmatpush1.msra.mxu0 %v492
    %597 = vmatprep.subr.mxu0 %v499
    %598 = vmatpush1.msra.mxu0 %v498
    %599 = vmatprep.subr.mxu0 %v505
    %600 = vmatpush1.msra.mxu0 %v504
    %601 = vmatprep.subr.mxu0 0.0
    %602 = vmatpush1.msra.mxu0 0.0
    %603 = vmatprep.subr.mxu0 0.0
    %604 = vmatpush1.msra.mxu0 0.0
    %605 = vmatprep.subr.mxu0 0.0
    %606 = vmatpush1.msra.mxu0 0.0
    %607 = vmatprep.subr.mxu0 0.0
    %608 = vmatpush1.msra.mxu0 0.0
    %609 = vmatprep.subr.mxu0 0.0
    %610 = vmatpush1.msra.mxu0 0.0
    %611 = vmatprep.subr.mxu0 0.0
    %612 = vmatpush1.msra.mxu0 0.0
    %613 = vmatprep.subr.mxu0 0.0
    %614 = vmatpush1.msra.mxu0 0.0
    %615 = vmatprep.subr.mxu0 0.0
    %616 = vmatpush1.msra.mxu0 0.0
    %617 = vmatprep.subr.mxu0 0.0
    %618 = vmatpush1.msra.mxu0 0.0
    %619 = vmatprep.subr.mxu0 0.0
    %620 = vmatpush1.msra.mxu0 0.0
    %621 = vmatprep.subr.mxu0 0.0
    %622 = vmatpush1.msra.mxu0 0.0
    %623 = vmatprep.subr.mxu0 0.0
    %624 = vmatpush1.msra.mxu0 0.0
    %625 = vmatprep.subr.mxu0 0.0
    %626 = vmatpush1.msra.mxu0 0.0
    %627 = vmatprep.subr.mxu0 0.0
    %628 = vmatpush1.msra.mxu0 0.0
    %629 = vmatprep.subr.mxu0 0.0
    %630 = vmatpush1.msra.mxu0 0.0
    %631 = vmatprep.subr.mxu0 0.0
    %632 = vmatpush1.msra.mxu0 0.0
    %633 = vmatprep.subr.mxu0 0.0
    %634 = vmatpush1.msra.mxu0 0.0
    %635 = vmatprep.subr.mxu0 0.0
    %636 = vmatpush1.msra.mxu0 0.0
    %637 = vmatprep.subr.mxu0 0.0
    %638 = vmatpush1.msra.mxu0 0.0
    %639 = vmatprep.subr.mxu0 0.0
    %640 = vmatpush1.msra.mxu0 0.0
    %641 = vmatprep.subr.mxu0 0.0
    %642 = vmatpush1.msra.mxu0 0.0
    %643 = vmatprep.subr.mxu0 0.0
    %644 = vmatpush1.msra.mxu0 0.0
    %645 = vmatprep.subr.mxu0 0.0
    %646 = vmatpush1.msra.mxu0 0.0
    %647 = vmatprep.mubr.f32.mxu0 0.0
    %648 = vmatmul.mubr.f32.gmra.mrb[0].mxu0 %v510
    %v649 = vpop.f32.mrb[0].mxu0
    %v650 = vadd.f32 0.0, %v649
    %v651 = vpop.f32.mrb[0].mxu0
    %v652 = vadd.f32 0.0, %v651
    %653 = vdwg.mxu0
    %654 = vmatprep.subr.mxu0 %v459
    %655 = vmatpush1.msra.mxu0 %v458
    %656 = vmatprep.subr.mxu0 %v465
    %657 = vmatpush1.msra.mxu0 %v464
    %658 = vmatprep.subr.mxu0 %v471
    %659 = vmatpush1.msra.mxu0 %v470
    %660 = vmatprep.subr.mxu0 %v477
    %661 = vmatpush1.msra.mxu0 %v476
    %662 = vmatprep.subr.mxu0 %v483
    %663 = vmatpush1.msra.mxu0 %v482
    %664 = vmatprep.subr.mxu0 %v489
    %665 = vmatpush1.msra.mxu0 %v488
    %666 = vmatprep.subr.mxu0 %v495
    %667 = vmatpush1.msra.mxu0 %v494
    %668 = vmatprep.subr.mxu0 %v501
    %669 = vmatpush1.msra.mxu0 %v500
    %670 = vmatprep.subr.mxu0 %v507
    %671 = vmatpush1.msra.mxu0 %v506
    %672 = vmatprep.subr.mxu0 0.0
    %673 = vmatpush1.msra.mxu0 0.0
    %674 = vmatprep.subr.mxu0 0.0
    %675 = vmatpush1.msra.mxu0 0.0
    %676 = vmatprep.subr.mxu0 0.0
    %677 = vmatpush1.msra.mxu0 0.0
    %678 = vmatprep.subr.mxu0 0.0
    %679 = vmatpush1.msra.mxu0 0.0
    %680 = vmatprep.subr.mxu0 0.0
    %681 = vmatpush1.msra.mxu0 0.0
    %682 = vmatprep.subr.mxu0 0.0
    %683 = vmatpush1.msra.mxu0 0.0
    %684 = vmatprep.subr.mxu0 0.0
    %685 = vmatpush1.msra.mxu0 0.0
    %686 = vmatprep.subr.mxu0 0.0
    %687 = vmatpush1.msra.mxu0 0.0
    %688 = vmatprep.subr.mxu0 0.0
    %689 = vmatpush1.msra.mxu0 0.0
    %690 = vmatprep.subr.mxu0 0.0
    %691 = vmatpush1.msra.mxu0 0.0
    %692 = vmatprep.subr.mxu0 0.0
    %693 = vmatpush1.msra.mxu0 0.0
    %694 = vmatprep.subr.mxu0 0.0
    %695 = vmatpush1.msra.mxu0 0.0
    %696 = vmatprep.subr.mxu0 0.0
    %697 = vmatpush1.msra.mxu0 0.0
    %698 = vmatprep.subr.mxu0 0.0
    %699 = vmatpush1.msra.mxu0 0.0
    %700 = vmatprep.subr.mxu0 0.0
    %701 = vmatpush1.msra.mxu0 0.0
    %702 = vmatprep.subr.mxu0 0.0
    %703 = vmatpush1.msra.mxu0 0.0
    %704 = vmatprep.subr.mxu0 0.0
    %705 = vmatpush1.msra.mxu0 0.0
    %706 = vmatprep.subr.mxu0 0.0
    %707 = vmatpush1.msra.mxu0 0.0
    %708 = vmatprep.subr.mxu0 0.0
    %709 = vmatpush1.msra.mxu0 0.0
    %710 = vmatprep.subr.mxu0 0.0
    %711 = vmatpush1.msra.mxu0 0.0
    %712 = vmatprep.subr.mxu0 0.0
    %713 = vmatpush1.msra.mxu0 0.0
    %714 = vmatprep.subr.mxu0 0.0
    %715 = vmatpush1.msra.mxu0 0.0
    %716 = vmatprep.subr.mxu0 0.0
    %717 = vmatpush1.msra.mxu0 0.0
    %718 = vmatprep.mubr.f32.mxu0 0.0
    %719 = vmatmul.mubr.f32.gmra.mrb[0].mxu0 %v510
    %v720 = vpop.f32.mrb[0].mxu0
    %v721 = vadd.f32 0.0, %v720
    %v722 = vpop.f32.mrb[0].mxu0
    %v723 = vadd.f32 0.0, %v722
    %724 = vdwg.mxu0
    %v725 = vlaneseq
    %v726 = vand.u32 %v725, 127
    %v727 = vadd.s32 %v726, 128
    %v728 = vadd.s32 %v726, 256
    %v729 = vadd.s32 %v726, 384
    %v730 = vadd.s32 %v726, 512
    %v731 = vadd.s32 %v726, 640
    %vm732 = vcmp.lt.s32.totalorder %v726, 0
    %v733 = vsub.s32 0, %v726
    %v734 = vsel %vm732, %v733, %v726
    %v735 = vmul.u32.u64.compose %v734, 2863311531
    %v736 = vextract.low.u32 %v735
    %v737 = vextract.high.u32 %v735
    %v738 = vshrl.u32 %v737, 4
    %v739 = vmul.u32 %v738, 24
    %v740 = vsub.s32 %v734, %v739
    %v741 = vsub.s32 0, %v740
    %v742 = vsel %vm732, %v741, %v740
    %vm743 = vcmp.lt.s32.totalorder %v727, 0
    %v744 = vsub.s32 0, %v727
    %v745 = vsel %vm743, %v744, %v727
    %v746 = vmul.u32.u64.compose %v745, 2863311531
    %v747 = vextract.low.u32 %v746
    %v748 = vextract.high.u32 %v746
    %v749 = vshrl.u32 %v748, 4
    %v750 = vmul.u32 %v749, 24
    %v751 = vsub.s32 %v745, %v750
    %v752 = vsub.s32 0, %v751
    %v753 = vsel %vm743, %v752, %v751
    %vm754 = vcmp.lt.s32.totalorder %v728, 0
    %v755 = vsub.s32 0, %v728
    %v756 = vsel %vm754, %v755, %v728
    %v757 = vmul.u32.u64.compose %v756, 2863311531
    %v758 = vextract.low.u32 %v757
    %v759 = vextract.high.u32 %v757
    %v760 = vshrl.u32 %v759, 4
    %v761 = vmul.u32 %v760, 24
    %v762 = vsub.s32 %v756, %v761
    %v763 = vsub.s32 0, %v762
    %v764 = vsel %vm754, %v763, %v762
    %vm765 = vcmp.lt.s32.totalorder %v729, 0
    %v766 = vsub.s32 0, %v729
    %v767 = vsel %vm765, %v766, %v729
    %v768 = vmul.u32.u64.compose %v767, 2863311531
    %v769 = vextract.low.u32 %v768
    %v770 = vextract.high.u32 %v768
    %v771 = vshrl.u32 %v770, 4
    %v772 = vmul.u32 %v771, 24
    %v773 = vsub.s32 %v767, %v772
    %v774 = vsub.s32 0, %v773
    %v775 = vsel %vm765, %v774, %v773
    %vm776 = vcmp.lt.s32.totalorder %v730, 0
    %v777 = vsub.s32 0, %v730
    %v778 = vsel %vm776, %v777, %v730
    %v779 = vmul.u32.u64.compose %v778, 2863311531
    %v780 = vextract.low.u32 %v779
    %v781 = vextract.high.u32 %v779
    %v782 = vshrl.u32 %v781, 4
    %v783 = vmul.u32 %v782, 24
    %v784 = vsub.s32 %v778, %v783
    %v785 = vsub.s32 0, %v784
    %v786 = vsel %vm776, %v785, %v784
    %vm787 = vcmp.lt.s32.totalorder %v731, 0
    %v788 = vsub.s32 0, %v731
    %v789 = vsel %vm787, %v788, %v731
    %v790 = vmul.u32.u64.compose %v789, 2863311531
    %v791 = vextract.low.u32 %v790
    %v792 = vextract.high.u32 %v790
    %v793 = vshrl.u32 %v792, 4
    %v794 = vmul.u32 %v793, 24
    %v795 = vsub.s32 %v789, %v794
    %v796 = vsub.s32 0, %v795
    %v797 = vsel %vm787, %v796, %v795
    %vm798 = vcmp.ne.s32.totalorder %v742, 0
    %vm799 = vcmp.ne.s32.totalorder %v753, 0
    %vm800 = vcmp.ne.s32.totalorder %v764, 0
    %vm801 = vcmp.ne.s32.totalorder %v775, 0
    %vm802 = vcmp.ne.s32.totalorder %v786, 0
    %vm803 = vcmp.ne.s32.totalorder %v797, 0
    %vm804 = vcmp.lt.s32.totalorder %v742, 0
    %vm805 = vcmp.lt.s32.totalorder %v753, 0
    %vm806 = vcmp.lt.s32.totalorder %v764, 0
    %vm807 = vcmp.lt.s32.totalorder %v775, 0
    %vm808 = vcmp.lt.s32.totalorder %v786, 0
    %vm809 = vcmp.lt.s32.totalorder %v797, 0
    %vm810 = vmand %vm804, %vm798
    %vm811 = vmand %vm805, %vm799
    %vm812 = vmand %vm806, %vm800
    %vm813 = vmand %vm807, %vm801
    %vm814 = vmand %vm808, %vm802
    %vm815 = vmand %vm809, %vm803
    %v816 = vadd.s32 %v742, 24
    %v817 = vadd.s32 %v753, 24
    %v818 = vadd.s32 %v764, 24
    %v819 = vadd.s32 %v775, 24
    %v820 = vadd.s32 %v786, 24
    %v821 = vadd.s32 %v797, 24
    %v822 = vsel %vm810, %v816, %v742
    %v823 = vsel %vm811, %v817, %v753
    %v824 = vsel %vm812, %v818, %v764
    %v825 = vsel %vm813, %v819, %v775
    %v826 = vsel %vm814, %v820, %v786
    %v827 = vsel %vm815, %v821, %v797
    %vm828 = vcmp.lt.s32.totalorder %v822, 16
    %vm829 = vcmp.lt.s32.totalorder %v823, 16
    %vm830 = vcmp.lt.s32.totalorder %v824, 16
    %vm831 = vcmp.lt.s32.totalorder %v825, 16
    %vm832 = vcmp.lt.s32.totalorder %v826, 16
    %vm833 = vcmp.lt.s32.totalorder %v827, 16
    %v834 = vsel %vm828, 1.0, 0.0
    %v835 = vsel %vm829, 1.0, 0.0
    %v836 = vsel %vm830, 1.0, 0.0
    %v837 = vsel %vm831, 1.0, 0.0
    %v838 = vsel %vm832, 1.0, 0.0
    %v839 = vsel %vm833, 1.0, 0.0
    %v840 = vmul.f32 %v579, %v834
    %v841 = vmul.f32 %v581, %v835
    %v842 = vmul.f32 %v650, %v836
    %v843 = vmul.f32 %v652, %v837
    %v844 = vmul.f32 %v721, %v838
    %v845 = vmul.f32 %v723, %v839
    %v846 = vadd.f32 %v840, %v841
    %v847 = vadd.f32 %v846, %v842
    %v848 = vadd.f32 %v847, %v843
    %v849 = vadd.f32 %v848, %v844
    %v850 = vadd.f32 %v849, %v845
    %851 = vadd.xlane.f32.xlu0 %v850
    %v852 = vpop.xlane.xlu0 %851
    %v853 = vmul.f32 %v840, %v579
    %v854 = vmul.f32 %v841, %v581
    %v855 = vmul.f32 %v842, %v650
    %v856 = vmul.f32 %v843, %v652
    %v857 = vmul.f32 %v844, %v721
    %v858 = vmul.f32 %v845, %v723
    %v859 = vadd.f32 %v853, %v854
    %v860 = vadd.f32 %v859, %v855
    %v861 = vadd.f32 %v860, %v856
    %v862 = vadd.f32 %v861, %v857
    %v863 = vadd.f32 %v862, %v858
    %864 = vadd.xlane.f32.xlu0 %v863
    %v865 = vpop.xlane.xlu0 %864
    %v866 = vmul.f32 %v852, 0.001953125
    %v867 = vmul.f32 %v865, 0.001953125
    %v868 = vmul.f32 %v866, %v866
    %v869 = vsub.f32 %v867, %v868
    %v870 = vmax.f32 %v869, 0.0
    %v871 = vld [vmem:[%s2] sm:$0xff]
    %v872 = vadd.f32 %v870, 1e-05
    %v873 = vrsqrt.pop %v872
    %v874 = vmul.f32 %v871, %v873
    %v875 = vld [vmem:[%s3] sm:$0xff]
    %v876 = vmul.f32 %v866, %v874
    %v877 = vsub.f32 %v875, %v876
    %879 = vset.pattern.permute.xlu0 0
    %880 = vperm.xlu0 %879, %v874
    %v881 = vpop.permute.xlu0 %880
    %v883 = vmul.f32 %v579, %v881
    %v884 = vmul.f32 %v581, %v881
    %v885 = vmul.f32 %v650, %v881
    %v886 = vmul.f32 %v652, %v881
    %v887 = vmul.f32 %v721, %v881
    %v888 = vmul.f32 %v723, %v881
    %890 = vset.pattern.permute.xlu0 0
    %891 = vperm.xlu0 %890, %v877
    %v892 = vpop.permute.xlu0 %891
    %v894 = vadd.f32 %v883, %v892
    %v895 = vadd.f32 %v884, %v892
    %v896 = vadd.f32 %v885, %v892
    %v897 = vadd.f32 %v886, %v892
    %v898 = vadd.f32 %v887, %v892
    %v899 = vadd.f32 %v888, %v892
    %v900 = vsub.f32 0.0, %v894
    %v901 = vsub.f32 0.0, %v895
    %v902 = vsub.f32 0.0, %v896
    %v903 = vsub.f32 0.0, %v897
    %v904 = vsub.f32 0.0, %v898
    %v905 = vsub.f32 0.0, %v899
    %v906 = vmul.f32 %v900, 1.442695
    %v907 = vpow.pop %v906
    %v908 = vmul.f32 %v901, 1.442695
    %v909 = vpow.pop %v908
    %v910 = vmul.f32 %v902, 1.442695
    %v911 = vpow.pop %v910
    %v912 = vmul.f32 %v903, 1.442695
    %v913 = vpow.pop %v912
    %v914 = vmul.f32 %v904, 1.442695
    %v915 = vpow.pop %v914
    %v916 = vmul.f32 %v905, 1.442695
    %v917 = vpow.pop %v916
    %v918 = vadd.f32 %v907, 1.0
    %v919 = vadd.f32 %v909, 1.0
    %v920 = vadd.f32 %v911, 1.0
    %v921 = vadd.f32 %v913, 1.0
    %v922 = vadd.f32 %v915, 1.0
    %v923 = vadd.f32 %v917, 1.0
    %v924 = vrcp.pop %v918
    %v925 = vrcp.pop %v919
    %v926 = vrcp.pop %v920
    %v927 = vrcp.pop %v921
    %v928 = vrcp.pop %v922
    %v929 = vrcp.pop %v923
    %v930 = vmul.f32 %v894, %v924
    %v931 = vmul.f32 %v895, %v925
    %v932 = vmul.f32 %v896, %v926
    %v933 = vmul.f32 %v897, %v927
    %v934 = vmul.f32 %v898, %v928
    %v935 = vmul.f32 %v899, %v929
    %936 = vst [vmem:[#allocation6] sm:$0xff] %v930
    %937 = vst [vmem:[#allocation6 + $0x8] sm:$0xff] %v931
    %938 = vst [vmem:[#allocation6 + $0x10] sm:$0xff] %v932
    %s939 = scalar_lea.vmem [#allocation6], 24
    %940 = vst [vmem:[%s939] sm:$0xff] %v933
    %941 = vst [vmem:[%s939 + $0x8] sm:$0xff] %v934
    %942 = vst [vmem:[%s939 + $0x10] sm:$0xff] %v935
    // Predicated region
    $region22: #{tpu_custom_call.1} parent=1 // pred_check
      _
    $region23: #{tpu_custom_call.1} parent=1 // pred_check_branch
      %944 = sbr.rel (0) target = $region25
    $region24: #{tpu_custom_call.1} parent=1 // pred_region
      %s946 = ssub.s32 768, 768
      %947 = vsyncadd [#allocation5], %s946
      %s948 = sshll.u32 [#allocation6], 4
      %s949 = int_to_ptr.vmem [resolvable:$true] %s948
      %954 = dma.vmem_to_hbm [thread:$0]  %s949, 768, %s4, [#allocation5], 384, 384, 24
    $region25: #{tpu_custom_call.1} parent=1 // pred_fallthru
      _
    // Predicated region
    $region26: #{tpu_custom_call.1} parent=1 // pred_check
      _
    $region27: #{tpu_custom_call.1} parent=1 // pred_check_branch
      %956 = sbr.rel (0) target = $region29
    $region28: #{tpu_custom_call.1} parent=1 // pred_region
      %957 = dma.done [#allocation5], 768
    $region29: #{tpu_custom_call.1} parent=1 // pred_fallthru
      _
    %958 = vsyncpa [#allocation4], 1
    %959 = vsyncpa [#allocation5], 1

</llo_original>
